<compile_context>
chip_gen: v7x
topology: tpu7x:2x2x1
jax: 0.10.0
libtpu: 0.0.40
codegen_flags: <defaults>
</compile_context>

<pallas_src>
import functools

import jax
import jax.numpy as jnp
from jax.experimental import pallas as pl
from jax.experimental.pallas import tpu as pltpu


def _round_up(v, m):
    return ((v + m - 1) // m) * m


# ----------------------------------------------------------------------------
# Fused kernel: out = x @ W + b + x        (Residual(Linear) forward)
# ----------------------------------------------------------------------------
def _residual_linear_kernel(x_ref, w_ref, b_ref, r_ref, o_ref, acc_ref,
                            *, compute_dtype):
    k = pl.program_id(2)

    @pl.when(k == 0)
    def _init():
        # Fold bias + residual into the accumulator init: the finalize branch
        # becomes a pure cast + store, keeping the output writeback path short.
        acc_ref[...] = (r_ref[...].astype(jnp.float32)
                        + b_ref[...].astype(jnp.float32))

    # MXU work.  Operands are already streamed in compute_dtype from HBM for
    # the production path; the astype is a no-op then (and cheap VALU filler
    # under DMA slack otherwise).
    acc_ref[...] += jnp.dot(
        x_ref[...].astype(compute_dtype),
        w_ref[...].astype(compute_dtype),
        preferred_element_type=jnp.float32,
    )

    @pl.when(k == pl.num_programs(2) - 1)
    def _finalize():
        o_ref[...] = acc_ref[...].astype(o_ref.dtype)


def residual_linear(x, w, b, *, compute_dtype=jnp.bfloat16,
                    tm=512, tn=512, tk=512, force_pallas=False):
    """Residual(Linear(H, H)): out = x @ w + b + x, x has shape (..., H).

    Default 512 tiles are the sweet spot across v5e/v6e/v7x: ~128 FLOP/byte
    with bf16 operand streams, ~7 MiB double-buffered VMEM working set.
    (v6e can go to 1024x1024 tiles with vmem_limit raised; v7x should stay
    <= 512x1024 to respect its 64 MiB physical VMEM.)
    """
    *lead, H = x.shape
    assert w.shape == (H, H) and b.shape == (H,)
    x2d = x.reshape(-1, H)
    M = x2d.shape[0]

    # Shrink tiles for small problems; block dims must be (8, 128)-aligned or
    # equal the (padded) array extents.
    tm = min(tm, _round_up(M, 8))
    tn = min(tn, _round_up(H, 128))
    tk = min(tk, _round_up(H, 128))

    Mp = _round_up(M, tm)
    Np = _round_up(H, tn)   # N and K extents padded independently (no lcm)
    Kp = _round_up(H, tk)
    grid = (Mp // tm, Np // tn, Kp // tk)

    # Tiny problems: a single-step pallas_call pays padding copies, per-step
    # grid overhead and custom-call plumbing for zero benefit -> let XLA do it.
    if not force_pallas and grid[0] * grid[1] * grid[2] == 1:
        return (x2d @ w + b + x2d).reshape(*lead, H).astype(x.dtype)

    # Stream W in compute_dtype (it is re-read Mp//tm times).  Stream the LHS
    # x in compute_dtype only when it is re-read across N blocks; otherwise a
    # pre-cast copy would add HBM traffic instead of saving it.  The residual
    # operand stays in the original precision (numerics unchanged).
    w_s = w.astype(compute_dtype)
    lhs = x2d.astype(compute_dtype) if grid[1] >= 2 else x2d

    if (Mp, Kp) != (M, H):
        lhs = jnp.pad(lhs, ((0, Mp - M), (0, Kp - H)))
    res = x2d
    if (Mp, Np) != (M, H):
        res = jnp.pad(res, ((0, Mp - M), (0, Np - H)))
    if (Kp, Np) != (H, H):
        w_s = jnp.pad(w_s, ((0, Kp - H), (0, Np - H)))
    b2d = b.reshape(1, H)
    if Np != H:
        b2d = jnp.pad(b2d, ((0, 0), (0, Np - H)))

    out_dtype = x.dtype
    lhs_isz = jnp.dtype(lhs.dtype).itemsize
    w_isz = jnp.dtype(w_s.dtype).itemsize
    res_isz = jnp.dtype(res.dtype).itemsize
    out_isz = jnp.dtype(out_dtype).itemsize

    # Per-step VMEM working set (double-buffered inputs/outputs + f32 acc);
    # raise the scoped-VMEM limit with headroom, capped to fit v7x's 64 MiB.
    vmem_est = (2 * tm * tk * lhs_isz + 2 * tk * tn * w_isz
                + 2 * tm * tn * res_isz + 2 * tn * jnp.dtype(b2d.dtype).itemsize
                + 2 * tm * tn * out_isz + tm * tn * 4)
    vmem_limit = int(min(max(32 << 20, 2 * vmem_est), 48 << 20))

    # Advisory cost for XLA scheduling around the custom call.
    flops = 2 * Mp * Np * Kp
    bytes_accessed = (grid[1] * Mp * Kp * lhs_isz        # LHS re-read per N blk
                      + grid[0] * Kp * Np * w_isz        # W re-read per M blk
                      + Mp * Np * res_isz                # residual
                      + Np * jnp.dtype(b2d.dtype).itemsize
                      + Mp * Np * out_isz)               # output

    kernel = functools.partial(_residual_linear_kernel,
                               compute_dtype=compute_dtype)

    # NOTE: if xprof still shows exposed DMA, deepen pipelining on the two
    # K-varying streams (LHS, W) with pipeline_mode=pl.Buffered(3).
    out = pl.pallas_call(
        kernel,
        out_shape=jax.ShapeDtypeStruct((Mp, Np), out_dtype),
        grid_spec=pltpu.PrefetchScalarGridSpec(
            num_scalar_prefetch=0,
            grid=grid,
            in_specs=[
                # LHS K-slice of x (compute_dtype when re-read across N).
                pl.BlockSpec((tm, tk), lambda i, j, k: (i, k)),
                # Weight tile (compute_dtype stream).
                pl.BlockSpec((tk, tn), lambda i, j, k: (k, j)),
                # Bias tile (folded into the k==0 accumulator init).
                pl.BlockSpec((1, tn), lambda i, j, k: (0, j)),
                # Residual x tile, original precision, indexed by output (i,j).
                pl.BlockSpec((tm, tn), lambda i, j, k: (i, j)),
            ],
            out_specs=pl.BlockSpec((tm, tn), lambda i, j, k: (i, j)),
            scratch_shapes=[pltpu.VMEM((tm, tn), jnp.float32)],
        ),
        compiler_params=pltpu.CompilerParams(
            dimension_semantics=("parallel", "parallel", "arbitrary"),
            vmem_limit_bytes=vmem_limit),
        cost_estimate=pl.CostEstimate(flops=flops, transcendentals=0,
                                      bytes_accessed=bytes_accessed),
    )(lhs, w_s, b2d, res)

    if (Mp, Np) != (M, H):
        out = out[:M, :H]
    return out.reshape(*lead, H)


# ----------------------------------------------------------------------------
# Generic elementwise residual kernel: out = fn_out + x (fn evaluated in JAX).
# Pure memory-bound; VMEM-aware row/column tiling so large activations
# pipeline through VMEM without blowing the scoped limit on any generation.
# ----------------------------------------------------------------------------
def _residual_add_kernel(fx_ref, x_ref, o_ref):
    o_ref[...] = fx_ref[...] + x_ref[...]


def residual_add(fx, x, *, vmem_budget_bytes=6 << 20):
    assert fx.shape == x.shape and fx.dtype == x.dtype
    cols = x.shape[-1]
    flat_x = x.reshape(-1, cols)
    flat_fx = fx.reshape(-1, cols)
    rows, cols = flat_x.shape
    itemsize = jnp.dtype(x.dtype).itemsize

    # Column tile: lane-dense multiple of 128 (or the full extent when small),
    # chosen to minimize padding when the column axis must be tiled.
    cp128 = _round_up(cols, 128)
    if cols <= 128:
        ct, Cp = cols, cols
    elif cp128 <= 2048:
        ct = Cp = cp128
    else:
        ct, Cp = 2048, _round_up(cols, 2048)
        for cand in (2048, 1024, 512, 256, 128):
            cpc = _round_up(cols, cand)
            if cpc < Cp:
                ct, Cp = cand, cpc

    # Row tile from the VMEM budget: 3 streams x 2 pipeline buffers.
    rt = max(8, min(1024, (vmem_budget_bytes // (6 * ct * itemsize)) // 8 * 8))
    rt = min(rt, _round_up(rows, 8))
    Rp = _round_up(rows, rt)

    xp, fxp = flat_x, flat_fx
    if (Rp, Cp) != (rows, cols):
        pad = ((0, Rp - rows), (0, Cp - cols))
        xp = jnp.pad(flat_x, pad)
        fxp = jnp.pad(flat_fx, pad)

    out = pl.pallas_call(
        _residual_add_kernel,
        out_shape=jax.ShapeDtypeStruct((Rp, Cp), x.dtype),
        grid_spec=pltpu.PrefetchScalarGridSpec(
            num_scalar_prefetch=0,
            grid=(Rp // rt, Cp // ct),
            in_specs=[pl.BlockSpec((rt, ct), lambda i, j: (i, j)),
                      pl.BlockSpec((rt, ct), lambda i, j: (i, j))],
            out_specs=pl.BlockSpec((rt, ct), lambda i, j: (i, j)),
        ),
        compiler_params=pltpu.CompilerParams(
            dimension_semantics=("parallel", "parallel")),
    )(fxp, xp)

    if (Rp, Cp) != (rows, cols):
        out = out[:rows, :cols]
    return out.reshape(x.shape)


if __name__ == "__main__":
    key = jax.random.PRNGKey(0)
    kx, kw, kb, kx2, kw2, kb2 = jax.random.split(key, 6)

    # --- Small shape consistent with the module (hits the XLA fallback). ---
    B, S, H = 2, 8, 32
    x = jax.random.normal(kx, (B, S, H), dtype=jnp.float32)
    bound = 1.0 / (H ** 0.5)  # deterministic nn.Linear(H, H)-style init
    w = jax.random.uniform(kw, (H, H), jnp.float32, -bound, bound)
    b = jax.random.uniform(kb, (H,), jnp.float32, -bound, bound)
    ref = x @ w + b + x

    out_small = jax.block_until_ready(residual_linear(x, w, b))
    assert jnp.allclose(out_small, ref, atol=1e-5, rtol=1e-5), "fallback mismatch"

    # --- Force the fused Pallas kernel at the same small shape. ---
    out_f32 = jax.block_until_ready(
        residual_linear(x, w, b, compute_dtype=jnp.float32, force_pallas=True))
    assert jnp.allclose(out_f32, ref, atol=1e-5, rtol=1e-5), "f32 mismatch"

    out_bf16 = jax.block_until_ready(residual_linear(x, w, b, force_pallas=True))
    assert jnp.allclose(out_bf16, ref, atol=3e-2, rtol=3e-2), "bf16 mismatch"

    # --- Multi-block grid: exercises accumulator init/finalize, bf16 operand
    #     streaming, and the independent M/N/K padding + slicing. ---
    B2, S2, H2 = 2, 24, 320
    x2 = jax.random.normal(kx2, (B2, S2, H2), dtype=jnp.float32)
    bound2 = 1.0 / (H2 ** 0.5)
    w2 = jax.random.uniform(kw2, (H2, H2), jnp.float32, -bound2, bound2)
    b2 = jax.random.uniform(kb2, (H2,), jnp.float32, -bound2, bound2)
    ref2 = x2 @ w2 + b2 + x2
    out2 = jax.block_until_ready(
        residual_linear(x2, w2, b2, tm=32, tn=128, tk=128))
    assert jnp.allclose(out2, ref2, atol=3e-2, rtol=3e-2), "multi-block mismatch"

    # --- Generic tiled residual-add kernel. ---
    out_add = jax.block_until_ready(residual_add(x @ w + b, x))
    assert jnp.allclose(out_add, ref, atol=1e-5, rtol=1e-5), "add mismatch"

    print("KERNEL_OK")
</pallas_src>

<mosaic_0001>
module attributes {stable_mosaic.version = 11 : i64} {
  func.func @_residual_linear_kernel(%arg0: i32, %arg1: i32, %arg2: i32, %arg3: memref<16x128xf32, #tpu.memory_space<vmem>>, %arg4: memref<128x128xf32, #tpu.memory_space<vmem>>, %arg5: memref<1x128xf32, #tpu.memory_space<vmem>>, %arg6: memref<16x128xf32, #tpu.memory_space<vmem>>, %arg7: memref<16x128xf32, #tpu.memory_space<vmem>>, %arg8: memref<16x128xf32, #tpu.memory_space<vmem>>) attributes {dimension_semantics = [#tpu.dimension_semantics<parallel>, #tpu.dimension_semantics<parallel>, #tpu.dimension_semantics<arbitrary>], iteration_bounds = array<i64: 1, 1, 1>, scalar_prefetch = 0 : i64, scratch_operands = 1 : i64, tpu.core_type = #tpu.core_type<tc>, window_params = [{transform_indices = @transform_0, window_bounds = array<i64: 16, 128>}, {transform_indices = @transform_1, window_bounds = array<i64: 128, 128>}, {transform_indices = @transform_2, window_bounds = array<i64: 1, 128>}, {transform_indices = @transform_3, window_bounds = array<i64: 16, 128>}, {transform_indices = @transform_4, window_bounds = array<i64: 16, 128>}]} {
    %c0_i32 = arith.constant 0 : i32
    %0 = arith.cmpi eq, %arg2, %c0_i32 : i32
    %1 = arith.extui %0 : i1 to i32
    %c0_i32_0 = arith.constant 0 : i32
    %2 = arith.cmpi ne, %1, %c0_i32_0 : i32
    scf.if %2 {
      %c0_10 = arith.constant 0 : index
      %c0_11 = arith.constant 0 : index
      %12 = vector.load %arg6[%c0_10, %c0_11] : memref<16x128xf32, #tpu.memory_space<vmem>>, vector<16x128xf32>
      %c0_12 = arith.constant 0 : index
      %c0_13 = arith.constant 0 : index
      %13 = vector.load %arg5[%c0_12, %c0_13] : memref<1x128xf32, #tpu.memory_space<vmem>>, vector<1x128xf32>
      %14 = vector.broadcast %13 : vector<1x128xf32> to vector<16x128xf32>
      %15 = arith.addf %12, %14 : vector<16x128xf32>
      %c0_14 = arith.constant 0 : index
      %c0_15 = arith.constant 0 : index
      %16 = vector.load %arg8[%c0_14, %c0_15] : memref<16x128xf32, #tpu.memory_space<vmem>>, vector<16x128xf32>
      tpu.vector_store %arg8[%c0_14, %c0_15], %15 {strides = array<i32>} : memref<16x128xf32, #tpu.memory_space<vmem>>, vector<16x128xf32>,
    } else {
    }
    %c0 = arith.constant 0 : index
    %c0_1 = arith.constant 0 : index
    %3 = vector.load %arg8[%c0, %c0_1] : memref<16x128xf32, #tpu.memory_space<vmem>>, vector<16x128xf32>
    %c0_2 = arith.constant 0 : index
    %c0_3 = arith.constant 0 : index
    %4 = vector.load %arg3[%c0_2, %c0_3] : memref<16x128xf32, #tpu.memory_space<vmem>>, vector<16x128xf32>
    %c0_4 = arith.constant 0 : index
    %c0_5 = arith.constant 0 : index
    %5 = vector.load %arg4[%c0_4, %c0_5] : memref<128x128xf32, #tpu.memory_space<vmem>>, vector<128x128xf32>
    %cst = arith.constant dense<0.000000e+00> : vector<16x128xf32>
    %6 = tpu.matmul %4, %5, %cst {dimension_numbers = #tpu.dot_dimension_numbers<[1], [0], [0], [1], [0, 0, 1, 1], [], []>} : vector<16x128xf32>, vector<128x128xf32>, vector<16x128xf32> -> vector<16x128xf32>
    %7 = arith.addf %3, %6 : vector<16x128xf32>
    %c0_6 = arith.constant 0 : index
    %c0_7 = arith.constant 0 : index
    %8 = vector.load %arg8[%c0_6, %c0_7] : memref<16x128xf32, #tpu.memory_space<vmem>>, vector<16x128xf32>
    tpu.vector_store %arg8[%c0_6, %c0_7], %7 {strides = array<i32>} : memref<16x128xf32, #tpu.memory_space<vmem>>, vector<16x128xf32>,
    %c0_i32_8 = arith.constant 0 : i32
    %9 = arith.cmpi eq, %arg2, %c0_i32_8 : i32
    %10 = arith.extui %9 : i1 to i32
    %c0_i32_9 = arith.constant 0 : i32
    %11 = arith.cmpi ne, %10, %c0_i32_9 : i32
    scf.if %11 {
      %c0_10 = arith.constant 0 : index
      %c0_11 = arith.constant 0 : index
      %12 = vector.load %arg8[%c0_10, %c0_11] : memref<16x128xf32, #tpu.memory_space<vmem>>, vector<16x128xf32>
      %c0_12 = arith.constant 0 : index
      %c0_13 = arith.constant 0 : index
      %13 = vector.load %arg7[%c0_12, %c0_13] : memref<16x128xf32, #tpu.memory_space<vmem>>, vector<16x128xf32>
      tpu.vector_store %arg7[%c0_12, %c0_13], %12 {strides = array<i32>} : memref<16x128xf32, #tpu.memory_space<vmem>>, vector<16x128xf32>,
    } else {
    }
    return
  }
  func.func @transform_0(%arg0: i32, %arg1: i32, %arg2: i32) -> (i32, i32) {
    %c0_i32 = arith.constant 0 : i32
    return %arg0, %arg2 : i32, i32
  }
  func.func @transform_1(%arg0: i32, %arg1: i32, %arg2: i32) -> (i32, i32) {
    %c0_i32 = arith.constant 0 : i32
    return %arg2, %arg1 : i32, i32
  }
  func.func @transform_2(%arg0: i32, %arg1: i32, %arg2: i32) -> (i32, i32) {
    %c0_i32 = arith.constant 0 : i32
    %c0_i32_0 = arith.constant 0 : i32
    return %c0_i32, %arg1 : i32, i32
  }
  func.func @transform_3(%arg0: i32, %arg1: i32, %arg2: i32) -> (i32, i32) {
    %c0_i32 = arith.constant 0 : i32
    return %arg0, %arg1 : i32, i32
  }
  func.func @transform_4(%arg0: i32, %arg1: i32, %arg2: i32) -> (i32, i32) {
    %c0_i32 = arith.constant 0 : i32
    return %arg0, %arg1 : i32, i32
  }
}

</mosaic_0001>

<llo_original>
// kernel: tpu_custom_call.1
$region0: #{tpu_custom_call.1}
  #allocation0 [shape = 'u32[]', space=smem, size = 0x4, offset = 0x4, fixed_abs, tag = 'smem constant byte address 0x4 - core index']
  #allocation1 [shape = 'u32[144,128]{1,0:T(1,128)}', space=vmem, size = 0x12000, scoped, tag = 'internal scratch']
  #allocation2 [shape = 'f32[16,128]{1,0:T(8,128)}', space=vmem, size = 0x2000, scoped, tag = 'scratch operand']
  %s0 = inlined_call_operand.hbm [shape: f32[16,128], index: 0, kind: input, shape index: {}]
  %s1 = inlined_call_operand.hbm [shape: f32[128,128], index: 1, kind: input, shape index: {}]
  %s2 = inlined_call_operand.vmem [shape: f32[1,128], index: 2, kind: input, shape index: {}]
  %s3 = inlined_call_operand.hbm [shape: f32[16,128], index: 3, kind: input, shape index: {}]
  %s4 = inlined_call_operand.hbm [shape: f32[16,128], index: 4, kind: output, shape index: {}]
  %s5 = sld [smem:[#allocation0]]
  $region46: #{tpu_custom_call.1} parent=0
    _
  %s7 = ssub.s32 1, %s5
  %s8 = scalar_select 0, %s7, %s5
  $region1: #{tpu_custom_call.1} parent=0
    #allocation3 [shape = 'u8[8192]{0}', space=vmem, size = 0x2000, scoped, tag = 'input window, operand 0, single buffered']
    #allocation4 [shape = 's32[1]{0}', space=sflag, size = 0x4, scoped, tag = 'scoped memory for tpu_custom_call.1']
    #allocation5 [shape = 's32[1]{0}', space=sflag, size = 0x4, scoped, tag = 'scoped memory for tpu_custom_call.1']
    #allocation6 [shape = 'u8[65536]{0}', space=vmem, size = 0x10000, scoped, tag = 'input window, operand 1, single buffered']
    #allocation7 [shape = 's32[1]{0}', space=sflag, size = 0x4, scoped, tag = 'scoped memory for tpu_custom_call.1']
    #allocation8 [shape = 'u8[8192]{0}', space=vmem, size = 0x2000, scoped, tag = 'input window, operand 3, single buffered']
    #allocation9 [shape = 'u8[8192]{0}', space=vmem, size = 0x2000, scoped, tag = 'output window, operand 0, single buffered']
    %9 = vsyncpa [#allocation4], 0
    %10 = vsyncpa [#allocation7], 0
    %11 = vsyncpa [#allocation5], 0
    // Predicated region
    $region2: #{tpu_custom_call.1} parent=1 // pred_check
      _
    $region3: #{tpu_custom_call.1} parent=1 // pred_check_branch
      %13 = sbr.rel (0) target = $region5
    $region4: #{tpu_custom_call.1} parent=1 // pred_region
      %s15 = ssub.s32 256, 256
      %16 = vsyncadd [#allocation4], %s15
      %s17 = sshll.u32 [#allocation3], 4
      %s18 = int_to_ptr.vmem [resolvable:$true] %s17
      %23 = dma.hbm_to_vmem [thread:$0]  %s0, 256, %s18, [#allocation4], 128, 128, 8
    $region5: #{tpu_custom_call.1} parent=1 // pred_fallthru
      _
    // Predicated region
    $region6: #{tpu_custom_call.1} parent=1 // pred_check
      _
    $region7: #{tpu_custom_call.1} parent=1 // pred_check_branch
      %25 = sbr.rel (0) target = $region9
    $region8: #{tpu_custom_call.1} parent=1 // pred_region
      %s27 = ssub.s32 2048, 2048
      %28 = vsyncadd [#allocation7], %s27
      %s29 = sshll.u32 [#allocation6], 4
      %s30 = int_to_ptr.vmem [resolvable:$true] %s29
      %35 = dma.hbm_to_vmem [thread:$0]  %s1, 2048, %s30, [#allocation7], 128, 128, 8
    $region9: #{tpu_custom_call.1} parent=1 // pred_fallthru
      _
    // Predicated region
    $region10: #{tpu_custom_call.1} parent=1 // pred_check
      _
    $region11: #{tpu_custom_call.1} parent=1 // pred_check_branch
      %37 = sbr.rel (0) target = $region13
    $region12: #{tpu_custom_call.1} parent=1 // pred_region
      _
    $region13: #{tpu_custom_call.1} parent=1 // pred_fallthru
      _
    // Predicated region
    $region14: #{tpu_custom_call.1} parent=1 // pred_check
      _
    $region15: #{tpu_custom_call.1} parent=1 // pred_check_branch
      %39 = sbr.rel (0) target = $region17
    $region16: #{tpu_custom_call.1} parent=1 // pred_region
      %s41 = ssub.s32 256, 256
      %42 = vsyncadd [#allocation7], %s41
      %s43 = sshll.u32 [#allocation8], 4
      %s44 = int_to_ptr.vmem [resolvable:$true] %s43
      %49 = dma.hbm_to_vmem [thread:$0]  %s3, 256, %s44, [#allocation7], 128, 128, 8
    $region17: #{tpu_custom_call.1} parent=1 // pred_fallthru
      _
    // Predicated region
    $region18: #{tpu_custom_call.1} parent=1 // pred_check
      _
    $region19: #{tpu_custom_call.1} parent=1 // pred_check_branch
      %51 = sbr.rel (0) target = $region21
    $region20: #{tpu_custom_call.1} parent=1 // pred_region
      %52 = dma.done [#allocation4], 256
    $region21: #{tpu_custom_call.1} parent=1 // pred_fallthru
      _
    // Predicated region
    $region22: #{tpu_custom_call.1} parent=1 // pred_check
      _
    $region23: #{tpu_custom_call.1} parent=1 // pred_check_branch
      %54 = sbr.rel (0) target = $region25
    $region24: #{tpu_custom_call.1} parent=1 // pred_region
      %55 = dma.done [#allocation7], 2048
    $region25: #{tpu_custom_call.1} parent=1 // pred_fallthru
      _
    // Predicated region
    $region26: #{tpu_custom_call.1} parent=1 // pred_check
      _
    $region27: #{tpu_custom_call.1} parent=1 // pred_check_branch
      %57 = sbr.rel (0) target = $region29
    $region28: #{tpu_custom_call.1} parent=1 // pred_region
      %58 = dma.done [#allocation7], 256
    $region29: #{tpu_custom_call.1} parent=1 // pred_fallthru
      _
    %p59 = scmp.eq.s32.totalorder 0, 0
    // Predicated region
    $region30: #{tpu_custom_call.1} parent=1 // pred_check
      %p60 = pneg %p59
    $region31: #{tpu_custom_call.1} parent=1 // pred_check_branch
      %62 = sbr.rel (%p60) target = $region33
    $region32: #{tpu_custom_call.1} parent=1 // pred_region
      %v63 = vld [vmem:[#allocation8] sm:$0xff]
      %v64 = vld [vmem:[#allocation8 + $0x8] sm:$0xff]
      %v65 = vld [vmem:[%s2] sm:$0x1]
      %v67 = vlaneseq
      %v68 = vshrl.u32 %v67, 7
      %v69 = vsub.s32 0, %v68
      %v70 = vrot.slane %v65, %v69
      %v72 = vadd.f32 %v63, %v70
      %v73 = vadd.f32 %v64, %v70
      %74 = vst [vmem:[#allocation2] sm:$0xff] %v72
      %75 = vst [vmem:[#allocation2 + $0x8] sm:$0xff] %v73
    $region33: #{tpu_custom_call.1} parent=1 // pred_fallthru
      _
    %v76 = vld [vmem:[#allocation2] sm:$0xff]
    %v77 = vld [vmem:[#allocation2 + $0x8] sm:$0xff]
    %v78 = vld [vmem:[#allocation3] sm:$0xff]
    %v79 = vld [vmem:[#allocation3 + $0x8] sm:$0xff]
    %v80 = vld [vmem:[#allocation6] sm:$0xff]
    %v81 = vld [vmem:[#allocation6 + $0x8] sm:$0xff]
    %v82 = vld [vmem:[#allocation6 + $0x10] sm:$0xff]
    %v83 = vld [vmem:[#allocation6 + $0x18] sm:$0xff]
    %v84 = vld [vmem:[#allocation6 + $0x20] sm:$0xff]
    %v85 = vld [vmem:[#allocation6 + $0x28] sm:$0xff]
    %v86 = vld [vmem:[#allocation6 + $0x30] sm:$0xff]
    %v87 = vld [vmem:[#allocation6 + $0x38] sm:$0xff]
    %v88 = vld [vmem:[#allocation6 + $0x40] sm:$0xff]
    %v89 = vld [vmem:[#allocation6 + $0x48] sm:$0xff]
    %v90 = vld [vmem:[#allocation6 + $0x50] sm:$0xff]
    %v91 = vld [vmem:[#allocation6 + $0x58] sm:$0xff]
    %v92 = vld [vmem:[#allocation6 + $0x60] sm:$0xff]
    %v93 = vld [vmem:[#allocation6 + $0x68] sm:$0xff]
    %v94 = vld [vmem:[#allocation6 + $0x70] sm:$0xff]
    %v95 = vld [vmem:[#allocation6 + $0x78] sm:$0xff]
    %96 = vmatprep.subr.mxu0 0.0
    %97 = vmatpush1.msra.mxu0 %v80
    %98 = vmatprep.subr.mxu0 0.0
    %99 = vmatpush1.msra.mxu0 %v81
    %100 = vmatprep.subr.mxu0 0.0
    %101 = vmatpush1.msra.mxu0 %v82
    %102 = vmatprep.subr.mxu0 0.0
    %103 = vmatpush1.msra.mxu0 %v83
    %104 = vmatprep.subr.mxu0 0.0
    %105 = vmatpush1.msra.mxu0 %v84
    %106 = vmatprep.subr.mxu0 0.0
    %107 = vmatpush1.msra.mxu0 %v85
    %108 = vmatprep.subr.mxu0 0.0
    %109 = vmatpush1.msra.mxu0 %v86
    %110 = vmatprep.subr.mxu0 0.0
    %111 = vmatpush1.msra.mxu0 %v87
    %112 = vmatprep.subr.mxu0 0.0
    %113 = vmatpush1.msra.mxu0 %v88
    %114 = vmatprep.subr.mxu0 0.0
    %115 = vmatpush1.msra.mxu0 %v89
    %116 = vmatprep.subr.mxu0 0.0
    %117 = vmatpush1.msra.mxu0 %v90
    %118 = vmatprep.subr.mxu0 0.0
    %119 = vmatpush1.msra.mxu0 %v91
    %120 = vmatprep.subr.mxu0 0.0
    %121 = vmatpush1.msra.mxu0 %v92
    %122 = vmatprep.subr.mxu0 0.0
    %123 = vmatpush1.msra.mxu0 %v93
    %124 = vmatprep.subr.mxu0 0.0
    %125 = vmatpush1.msra.mxu0 %v94
    %126 = vmatprep.subr.mxu0 0.0
    %127 = vmatpush1.msra.mxu0 %v95
    %128 = vmatprep.subr.mxu0 0.0
    %129 = vmatpush1.msra.mxu0 0.0
    %130 = vmatprep.subr.mxu0 0.0
    %131 = vmatpush1.msra.mxu0 0.0
    %132 = vmatprep.subr.mxu0 0.0
    %133 = vmatpush1.msra.mxu0 0.0
    %134 = vmatprep.subr.mxu0 0.0
    %135 = vmatpush1.msra.mxu0 0.0
    %136 = vmatprep.subr.mxu0 0.0
    %137 = vmatpush1.msra.mxu0 0.0
    %138 = vmatprep.subr.mxu0 0.0
    %139 = vmatpush1.msra.mxu0 0.0
    %140 = vmatprep.subr.mxu0 0.0
    %141 = vmatpush1.msra.mxu0 0.0
    %142 = vmatprep.subr.mxu0 0.0
    %143 = vmatpush1.msra.mxu0 0.0
    %144 = vmatprep.subr.mxu0 0.0
    %145 = vmatpush1.msra.mxu0 0.0
    %146 = vmatprep.subr.mxu0 0.0
    %147 = vmatpush1.msra.mxu0 0.0
    %148 = vmatprep.subr.mxu0 0.0
    %149 = vmatpush1.msra.mxu0 0.0
    %150 = vmatprep.subr.mxu0 0.0
    %151 = vmatpush1.msra.mxu0 0.0
    %152 = vmatprep.subr.mxu0 0.0
    %153 = vmatpush1.msra.mxu0 0.0
    %154 = vmatprep.subr.mxu0 0.0
    %155 = vmatpush1.msra.mxu0 0.0
    %156 = vmatprep.subr.mxu0 0.0
    %157 = vmatpush1.msra.mxu0 0.0
    %158 = vmatprep.subr.mxu0 0.0
    %159 = vmatpush1.msra.mxu0 0.0
    %160 = vmatprep.mubr.f32.mxu0 0.0
    %161 = vmatmul.mubr.f32.gmra.mrb[0].mxu0 %v78
    %v162 = vpop.f32.mrb[0].mxu0
    %v163 = vadd.f32 0.0, %v162
    %v164 = vpop.f32.mrb[0].mxu0
    %165 = vmatprep.mubr.f32.mxu0 0.0
    %166 = vmatmul.mubr.f32.gmra.mrb[0].mxu0 %v79
    %v167 = vpop.f32.mrb[0].mxu0
    %v168 = vadd.f32 0.0, %v167
    %v169 = vpop.f32.mrb[0].mxu0
    %170 = vdwg.mxu0
    %v171 = vadd.f32 %v76, %v163
    %v172 = vadd.f32 %v77, %v168
    %173 = vst [vmem:[#allocation2] sm:$0xff] %v171
    %174 = vst [vmem:[#allocation2 + $0x8] sm:$0xff] %v172
    // Predicated region
    $region34: #{tpu_custom_call.1} parent=1 // pred_check
      %p175 = pneg %p59
    $region35: #{tpu_custom_call.1} parent=1 // pred_check_branch
      %177 = sbr.rel (%p175) target = $region37
    $region36: #{tpu_custom_call.1} parent=1 // pred_region
      %v178 = vld [vmem:[#allocation2] sm:$0xff]
      %v179 = vld [vmem:[#allocation2 + $0x8] sm:$0xff]
      %180 = vst [vmem:[#allocation9] sm:$0xff] %v178
      %181 = vst [vmem:[#allocation9 + $0x8] sm:$0xff] %v179
    $region37: #{tpu_custom_call.1} parent=1 // pred_fallthru
      _
    // Predicated region
    $region38: #{tpu_custom_call.1} parent=1 // pred_check
      _
    $region39: #{tpu_custom_call.1} parent=1 // pred_check_branch
      %183 = sbr.rel (0) target = $region41
    $region40: #{tpu_custom_call.1} parent=1 // pred_region
      %s185 = ssub.s32 256, 256
      %186 = vsyncadd [#allocation5], %s185
      %s187 = sshll.u32 [#allocation9], 4
      %s188 = int_to_ptr.vmem [resolvable:$true] %s187
      %193 = dma.vmem_to_hbm [thread:$0]  %s188, 256, %s4, [#allocation5], 128, 128, 8
    $region41: #{tpu_custom_call.1} parent=1 // pred_fallthru
      _
    // Predicated region
    $region42: #{tpu_custom_call.1} parent=1 // pred_check
      _
    $region43: #{tpu_custom_call.1} parent=1 // pred_check_branch
      %195 = sbr.rel (0) target = $region45
    $region44: #{tpu_custom_call.1} parent=1 // pred_region
      %196 = dma.done [#allocation5], 256
    $region45: #{tpu_custom_call.1} parent=1 // pred_fallthru
      _
    %197 = vsyncpa [#allocation4], 1
    %198 = vsyncpa [#allocation7], 1
    %199 = vsyncpa [#allocation5], 1

</llo_original>
